<compile_context>
chip_gen: v5e
topology: v5e:2x2
jax: 0.10.0
libtpu: 0.0.40
codegen_flags: <defaults>
</compile_context>

<pallas_src>
import numpy as np
import jax
import jax.numpy as jnp
from jax import lax
from jax.experimental import pallas as pl
from jax.experimental.pallas import tpu as pltpu


def _round_up(x, m):
    return (x + m - 1) // m * m


def _text_sentiment_kernel(text_ref, starts_ref, ends_ref,   # VMEM int32
                           emb_ref, wt_ref, b_ref,           # VMEM f32
                           out_ref):                         # VMEM f32 (TB, Cp)
    Np = text_ref.shape[0]           # padded total token count
    Vp = emb_ref.shape[0]            # padded vocab size
    TB = out_ref.shape[0]            # bag tile

    starts = starts_ref[...]                              # (TB, 1) int32
    ends = ends_ref[...]                                   # (TB, 1) int32
    counts = (ends - starts).astype(jnp.float32)           # (TB, 1)
    inv = 1.0 / jnp.maximum(counts, 1.0)                   # empty bag -> rows stay 0

    # Bag membership mask (TB, Np): 1 where token position belongs to the bag.
    pos = lax.broadcasted_iota(jnp.int32, (TB, Np), 1)
    member = ((pos >= starts) & (pos < ends)).astype(jnp.float32)

    # One-hot token-id matrix (Np, Vp).  Padded / OOB ids match no column.
    vocab = lax.broadcasted_iota(jnp.int32, (Np, Vp), 1)
    one_hot = (vocab == text_ref[...]).astype(jnp.float32)  # text_ref is (Np, 1)

    # EmbeddingBag(mean) on the MXU (exact integer-valued intermediates).
    counts_v = jnp.dot(member, one_hot,
                       preferred_element_type=jnp.float32)          # (TB, Vp)
    summed = jnp.dot(counts_v, emb_ref[...],
                     preferred_element_type=jnp.float32)            # (TB, Ep)
    pooled = summed * inv                                           # mean pooling

    # Linear: pooled @ W^T + b  (lane-dense (TB, Cp) store).
    out_ref[...] = jnp.dot(pooled, wt_ref[...],
                           preferred_element_type=jnp.float32) + b_ref[...]


def text_sentiment_forward(text, offsets, emb_weight, fc_weight, fc_bias,
                           *, bag_tile=8):
    """Equivalent of TextSentiment.forward(text, offsets)."""
    text = jnp.asarray(text, jnp.int32)
    offsets = jnp.asarray(offsets, jnp.int32)
    emb_weight = jnp.asarray(emb_weight, jnp.float32)
    fc_weight = jnp.asarray(fc_weight, jnp.float32)
    fc_bias = jnp.asarray(fc_bias, jnp.float32)

    B = offsets.shape[0]
    N = text.shape[0]
    V, E = emb_weight.shape
    C = fc_weight.shape[0]

    # Padded, lane-dense / MXU-friendly sizes.
    TB = bag_tile
    Bp = _round_up(max(B, 1), TB)
    Np = _round_up(max(N, 1), 128)
    Vp = _round_up(V, 128)
    Ep = _round_up(E, 128)
    Cp = _round_up(C, 128)

    # Token ids as a (Np, 1) column; padding ids = -1 (match no vocab row).
    text_col = jnp.full((Np, 1), -1, jnp.int32).at[:N, 0].set(text)

    # Per-bag [start, end); padded bags are empty (start = end = N).
    ends = jnp.concatenate([offsets[1:], jnp.array([N], jnp.int32)])
    starts_p = jnp.full((Bp, 1), N, jnp.int32).at[:B, 0].set(offsets)
    ends_p = jnp.full((Bp, 1), N, jnp.int32).at[:B, 0].set(ends)

    # Zero-padded weights: emb (Vp, Ep), fc^T (Ep, Cp), bias (1, Cp).
    emb_p = jnp.zeros((Vp, Ep), jnp.float32).at[:V, :E].set(emb_weight)
    wt_p = jnp.zeros((Ep, Cp), jnp.float32).at[:E, :C].set(fc_weight.T)
    b_p = jnp.zeros((1, Cp), jnp.float32).at[0, :C].set(fc_bias)

    # Explicit VMEM budget for the table-resident path (double-buffered
    # inputs/outputs + in-kernel intermediates), with generous headroom.
    vmem_bytes = 4 * (
        2 * (Np + 2 * TB + Vp * Ep + Ep * Cp + Cp + TB * Cp)   # pipelined blocks
        + Np * Vp + 2 * TB * Np + TB * Vp + 2 * TB * Ep        # intermediates
    )
    vmem_limit = int(min(100 * 2**20, max(16 * 2**20, 4 * vmem_bytes)))

    grid_spec = pltpu.PrefetchScalarGridSpec(
        num_scalar_prefetch=0,
        grid=(Bp // TB,),
        in_specs=[
            pl.BlockSpec((Np, 1), lambda i: (0, 0)),     # token ids
            pl.BlockSpec((TB, 1), lambda i: (i, 0)),     # bag starts (tiled)
            pl.BlockSpec((TB, 1), lambda i: (i, 0)),     # bag ends   (tiled)
            pl.BlockSpec((Vp, Ep), lambda i: (0, 0)),    # embedding table
            pl.BlockSpec((Ep, Cp), lambda i: (0, 0)),    # fc weight^T
            pl.BlockSpec((1, Cp), lambda i: (0, 0)),     # fc bias
        ],
        out_specs=pl.BlockSpec((TB, Cp), lambda i: (i, 0)),
    )

    out_p = pl.pallas_call(
        _text_sentiment_kernel,
        out_shape=jax.ShapeDtypeStruct((Bp, Cp), jnp.float32),
        grid_spec=grid_spec,
        compiler_params=pltpu.CompilerParams(
            dimension_semantics=("parallel",),           # v7x megacore sharding
            vmem_limit_bytes=vmem_limit,
        ),
    )(text_col, starts_p, ends_p, emb_p, wt_p, b_p)

    return out_p[:B, :C]


def _reference(text, offsets, emb_weight, fc_weight, fc_bias):
    """Plain-numpy reference of EmbeddingBag(mean) + Linear."""
    text = np.asarray(text)
    offsets = np.asarray(offsets)
    emb_w = np.asarray(emb_weight)
    B = offsets.shape[0]
    N = text.shape[0]
    ends = np.concatenate([offsets[1:], np.array([N])])
    pooled = np.zeros((B, emb_w.shape[1]), np.float32)
    for b in range(B):
        seg = text[offsets[b]:ends[b]]
        if seg.size > 0:
            pooled[b] = emb_w[seg].mean(axis=0)
    return pooled @ np.asarray(fc_weight).T + np.asarray(fc_bias)


if __name__ == "__main__":
    # Small, module-consistent shapes.
    vocab_size, embed_dim, num_class = 32, 32, 4
    B, N = 2, 8                              # 2 bags, 8 total tokens

    key = jax.random.PRNGKey(0)
    k_emb, k_fc, k_txt = jax.random.split(key, 3)

    initrange = 0.5
    emb_weight = jax.random.uniform(k_emb, (vocab_size, embed_dim),
                                    jnp.float32, -initrange, initrange)
    fc_weight = jax.random.uniform(k_fc, (num_class, embed_dim),
                                   jnp.float32, -initrange, initrange)
    fc_bias = jnp.zeros((num_class,), jnp.float32)

    text = jax.random.randint(k_txt, (N,), 0, vocab_size, jnp.int32)
    offsets = jnp.array([0, 5], jnp.int32)   # bag0: tokens[0:5], bag1: tokens[5:8]

    out = text_sentiment_forward(text, offsets, emb_weight, fc_weight, fc_bias)
    out = jax.block_until_ready(out)

    ref = _reference(text, offsets, emb_weight, fc_weight, fc_bias)
    np.testing.assert_allclose(np.asarray(out), ref, rtol=1e-5, atol=1e-5)

    print("KERNEL_OK")
</pallas_src>

<mosaic_0001>
module attributes {stable_mosaic.version = 11 : i64} {
  func.func @_text_sentiment_kernel(%arg0: i32, %arg1: memref<128x1xi32, #tpu.memory_space<vmem>>, %arg2: memref<8x1xi32, #tpu.memory_space<vmem>>, %arg3: memref<8x1xi32, #tpu.memory_space<vmem>>, %arg4: memref<128x128xf32, #tpu.memory_space<vmem>>, %arg5: memref<128x128xf32, #tpu.memory_space<vmem>>, %arg6: memref<1x128xf32, #tpu.memory_space<vmem>>, %arg7: memref<8x128xf32, #tpu.memory_space<vmem>>) attributes {dimension_semantics = [#tpu.dimension_semantics<parallel>], iteration_bounds = array<i64: 1>, scalar_prefetch = 0 : i64, scratch_operands = 0 : i64, tpu.core_type = #tpu.core_type<tc>, window_params = [{pipeline_mode = #tpu.pipeline_mode<synchronous>, transform_indices = @transform_0, window_bounds = array<i64: 128, 1>}, {transform_indices = @transform_1, window_bounds = array<i64: 8, 1>}, {transform_indices = @transform_2, window_bounds = array<i64: 8, 1>}, {pipeline_mode = #tpu.pipeline_mode<synchronous>, transform_indices = @transform_3, window_bounds = array<i64: 128, 128>}, {pipeline_mode = #tpu.pipeline_mode<synchronous>, transform_indices = @transform_4, window_bounds = array<i64: 128, 128>}, {pipeline_mode = #tpu.pipeline_mode<synchronous>, transform_indices = @transform_5, window_bounds = array<i64: 1, 128>}, {transform_indices = @transform_6, window_bounds = array<i64: 8, 128>}]} {
    %c0 = arith.constant 0 : index
    %c0_0 = arith.constant 0 : index
    %0 = vector.load %arg2[%c0, %c0_0] : memref<8x1xi32, #tpu.memory_space<vmem>>, vector<8x1xi32>
    %c0_1 = arith.constant 0 : index
    %c0_2 = arith.constant 0 : index
    %1 = vector.load %arg3[%c0_1, %c0_2] : memref<8x1xi32, #tpu.memory_space<vmem>>, vector<8x1xi32>
    %2 = arith.subi %1, %0 : vector<8x1xi32>
    %3 = arith.sitofp %2 : vector<8x1xi32> to vector<8x1xf32>
    %cst = arith.constant 1.000000e+00 : f32
    %4 = vector.broadcast %cst : f32 to vector<8x1xf32>
    %5 = arith.maximumf %3, %4 : vector<8x1xf32>
    %cst_3 = arith.constant 1.000000e+00 : f32
    %6 = vector.broadcast %cst_3 : f32 to vector<8x1xf32>
    %7 = arith.divf %6, %5 : vector<8x1xf32>
    %8 = tpu.iota {dimensions = array<i32: 1>} : vector<8x128xi32>
    %9 = vector.broadcast %0 : vector<8x1xi32> to vector<8x128xi32>
    %10 = arith.cmpi sge, %8, %9 : vector<8x128xi32>
    %11 = vector.broadcast %1 : vector<8x1xi32> to vector<8x128xi32>
    %12 = arith.cmpi slt, %8, %11 : vector<8x128xi32>
    %13 = arith.andi %10, %12 : vector<8x128xi1>
    %14 = arith.extui %13 : vector<8x128xi1> to vector<8x128xi32>
    %15 = arith.sitofp %14 : vector<8x128xi32> to vector<8x128xf32>
    %16 = tpu.iota {dimensions = array<i32: 1>} : vector<128x128xi32>
    %c0_4 = arith.constant 0 : index
    %c0_5 = arith.constant 0 : index
    %17 = vector.load %arg1[%c0_4, %c0_5] : memref<128x1xi32, #tpu.memory_space<vmem>>, vector<128x1xi32>
    %18 = vector.broadcast %17 : vector<128x1xi32> to vector<128x128xi32>
    %19 = arith.cmpi eq, %16, %18 : vector<128x128xi32>
    %20 = arith.extui %19 : vector<128x128xi1> to vector<128x128xi32>
    %21 = arith.sitofp %20 : vector<128x128xi32> to vector<128x128xf32>
    %cst_6 = arith.constant dense<0.000000e+00> : vector<8x128xf32>
    %22 = tpu.matmul %15, %21, %cst_6 {dimension_numbers = #tpu.dot_dimension_numbers<[1], [0], [0], [1], [0, 0, 1, 1], [], []>} : vector<8x128xf32>, vector<128x128xf32>, vector<8x128xf32> -> vector<8x128xf32>
    %c0_7 = arith.constant 0 : index
    %c0_8 = arith.constant 0 : index
    %23 = vector.load %arg4[%c0_7, %c0_8] : memref<128x128xf32, #tpu.memory_space<vmem>>, vector<128x128xf32>
    %cst_9 = arith.constant dense<0.000000e+00> : vector<8x128xf32>
    %24 = tpu.matmul %22, %23, %cst_9 {dimension_numbers = #tpu.dot_dimension_numbers<[1], [0], [0], [1], [0, 0, 1, 1], [], []>} : vector<8x128xf32>, vector<128x128xf32>, vector<8x128xf32> -> vector<8x128xf32>
    %25 = vector.broadcast %7 : vector<8x1xf32> to vector<8x128xf32>
    %26 = arith.mulf %24, %25 : vector<8x128xf32>
    %c0_10 = arith.constant 0 : index
    %c0_11 = arith.constant 0 : index
    %27 = vector.load %arg5[%c0_10, %c0_11] : memref<128x128xf32, #tpu.memory_space<vmem>>, vector<128x128xf32>
    %cst_12 = arith.constant dense<0.000000e+00> : vector<8x128xf32>
    %28 = tpu.matmul %26, %27, %cst_12 {dimension_numbers = #tpu.dot_dimension_numbers<[1], [0], [0], [1], [0, 0, 1, 1], [], []>} : vector<8x128xf32>, vector<128x128xf32>, vector<8x128xf32> -> vector<8x128xf32>
    %c0_13 = arith.constant 0 : index
    %c0_14 = arith.constant 0 : index
    %29 = vector.load %arg6[%c0_13, %c0_14] : memref<1x128xf32, #tpu.memory_space<vmem>>, vector<1x128xf32>
    %30 = vector.broadcast %29 : vector<1x128xf32> to vector<8x128xf32>
    %31 = arith.addf %28, %30 : vector<8x128xf32>
    %c0_15 = arith.constant 0 : index
    %c0_16 = arith.constant 0 : index
    %32 = vector.load %arg7[%c0_15, %c0_16] : memref<8x128xf32, #tpu.memory_space<vmem>>, vector<8x128xf32>
    tpu.vector_store %arg7[%c0_15, %c0_16], %31 {strides = array<i32>} : memref<8x128xf32, #tpu.memory_space<vmem>>, vector<8x128xf32>,
    return
  }
  func.func @transform_0(%arg0: i32) -> (i32, i32) {
    %c0_i32 = arith.constant 0 : i32
    %c0_i32_0 = arith.constant 0 : i32
    %c0_i32_1 = arith.constant 0 : i32
    return %c0_i32, %c0_i32_0 : i32, i32
  }
  func.func @transform_1(%arg0: i32) -> (i32, i32) {
    %c0_i32 = arith.constant 0 : i32
    %c0_i32_0 = arith.constant 0 : i32
    return %arg0, %c0_i32 : i32, i32
  }
  func.func @transform_2(%arg0: i32) -> (i32, i32) {
    %c0_i32 = arith.constant 0 : i32
    %c0_i32_0 = arith.constant 0 : i32
    return %arg0, %c0_i32 : i32, i32
  }
  func.func @transform_3(%arg0: i32) -> (i32, i32) {
    %c0_i32 = arith.constant 0 : i32
    %c0_i32_0 = arith.constant 0 : i32
    %c0_i32_1 = arith.constant 0 : i32
    return %c0_i32, %c0_i32_0 : i32, i32
  }
  func.func @transform_4(%arg0: i32) -> (i32, i32) {
    %c0_i32 = arith.constant 0 : i32
    %c0_i32_0 = arith.constant 0 : i32
    %c0_i32_1 = arith.constant 0 : i32
    return %c0_i32, %c0_i32_0 : i32, i32
  }
  func.func @transform_5(%arg0: i32) -> (i32, i32) {
    %c0_i32 = arith.constant 0 : i32
    %c0_i32_0 = arith.constant 0 : i32
    %c0_i32_1 = arith.constant 0 : i32
    return %c0_i32, %c0_i32_0 : i32, i32
  }
  func.func @transform_6(%arg0: i32) -> (i32, i32) {
    %c0_i32 = arith.constant 0 : i32
    %c0_i32_0 = arith.constant 0 : i32
    return %arg0, %c0_i32 : i32, i32
  }
}

</mosaic_0001>

<llo_original>
// kernel: tpu_custom_call.1
$region0: #{tpu_custom_call.1}
  #allocation0 [shape = 'u32[]', space=smem, size = 0x4, offset = 0x4, fixed_abs, tag = 'smem constant byte address 0x4 - core index']
  #allocation1 [shape = 'u32[72,128]{1,0:T(1,128)}', space=vmem, size = 0x9000, scoped, tag = 'internal scratch']
  %s0 = inlined_call_operand.vmem [shape: s32[128,1], index: 0, kind: input, shape index: {}]
  %s1 = inlined_call_operand.vmem [shape: s32[8,1], index: 1, kind: input, shape index: {}]
  %s2 = inlined_call_operand.vmem [shape: s32[8,1], index: 2, kind: input, shape index: {}]
  %s3 = inlined_call_operand.vmem [shape: f32[128,128], index: 3, kind: input, shape index: {}]
  %s4 = inlined_call_operand.hbm [shape: f32[128,128], index: 4, kind: input, shape index: {}]
  %s5 = inlined_call_operand.vmem [shape: f32[1,128], index: 5, kind: input, shape index: {}]
  %s6 = inlined_call_operand.hbm [shape: f32[8,128], index: 6, kind: output, shape index: {}]
  %s7 = sld [smem:[#allocation0]]
  $region38: #{tpu_custom_call.1} parent=0
    _
  %s9 = ssub.s32 1, %s7
  %s10 = scalar_select 0, %s9, %s7
  $region1: #{tpu_custom_call.1} parent=0
    #allocation2 [shape = 'u8[65536]{0}', space=vmem, size = 0x10000, scoped, tag = 'input window, operand 4, single buffered']
    #allocation3 [shape = 's32[1]{0}', space=sflag, size = 0x4, scoped, tag = 'scoped memory for tpu_custom_call.1']
    #allocation4 [shape = 's32[1]{0}', space=sflag, size = 0x4, scoped, tag = 'scoped memory for tpu_custom_call.1']
    #allocation5 [shape = 'u8[4096]{0}', space=vmem, size = 0x1000, scoped, tag = 'output window, operand 0, single buffered']
    %11 = vsyncpa [#allocation3], 0
    %12 = vsyncpa [#allocation4], 0
    // Predicated region
    $region2: #{tpu_custom_call.1} parent=1 // pred_check
      _
    $region3: #{tpu_custom_call.1} parent=1 // pred_check_branch
      %14 = sbr.rel (0) target = $region5
    $region4: #{tpu_custom_call.1} parent=1 // pred_region
      _
    $region5: #{tpu_custom_call.1} parent=1 // pred_fallthru
      _
    // Predicated region
    $region6: #{tpu_custom_call.1} parent=1 // pred_check
      _
    $region7: #{tpu_custom_call.1} parent=1 // pred_check_branch
      %16 = sbr.rel (0) target = $region9
    $region8: #{tpu_custom_call.1} parent=1 // pred_region
      _
    $region9: #{tpu_custom_call.1} parent=1 // pred_fallthru
      _
    // Predicated region
    $region10: #{tpu_custom_call.1} parent=1 // pred_check
      _
    $region11: #{tpu_custom_call.1} parent=1 // pred_check_branch
      %18 = sbr.rel (0) target = $region13
    $region12: #{tpu_custom_call.1} parent=1 // pred_region
      _
    $region13: #{tpu_custom_call.1} parent=1 // pred_fallthru
      _
    // Predicated region
    $region14: #{tpu_custom_call.1} parent=1 // pred_check
      _
    $region15: #{tpu_custom_call.1} parent=1 // pred_check_branch
      %20 = sbr.rel (0) target = $region17
    $region16: #{tpu_custom_call.1} parent=1 // pred_region
      _
    $region17: #{tpu_custom_call.1} parent=1 // pred_fallthru
      _
    // Predicated region
    $region18: #{tpu_custom_call.1} parent=1 // pred_check
      _
    $region19: #{tpu_custom_call.1} parent=1 // pred_check_branch
      %22 = sbr.rel (0) target = $region21
    $region20: #{tpu_custom_call.1} parent=1 // pred_region
      %24 = vsyncadd [#allocation3], 0
      %s25 = sshll.u32 %s4, 4
      %s26 = int_to_ptr.hbm [resolvable:$true] %s25
      %s27 = sshll.u32 [#allocation2], 4
      %s28 = int_to_ptr.vmem [resolvable:$true] %s27
      %33 = dma.hbm_to_vmem [thread:$0]  %s26, 2048, %s28, [#allocation3], 128, 128, 8
    $region21: #{tpu_custom_call.1} parent=1 // pred_fallthru
      _
    // Predicated region
    $region22: #{tpu_custom_call.1} parent=1 // pred_check
      _
    $region23: #{tpu_custom_call.1} parent=1 // pred_check_branch
      %35 = sbr.rel (0) target = $region25
    $region24: #{tpu_custom_call.1} parent=1 // pred_region
      _
    $region25: #{tpu_custom_call.1} parent=1 // pred_fallthru
      _
    // Predicated region
    $region26: #{tpu_custom_call.1} parent=1 // pred_check
      _
    $region27: #{tpu_custom_call.1} parent=1 // pred_check_branch
      %37 = sbr.rel (0) target = $region29
    $region28: #{tpu_custom_call.1} parent=1 // pred_region
      %39 = dma.done [#allocation3], 2048
    $region29: #{tpu_custom_call.1} parent=1 // pred_fallthru
      _
    %v40 = vld [vmem:[%s1] sm:$0xff]
    %v41 = vld [vmem:[%s2] sm:$0xff]
    %v42 = vsub.s32 %v41, %v40
    %v43 = vcvt.s32.f32 %v42
    %v44 = vmax.f32 %v43, 1.0
    %v45 = vrcp.pop %v44
    %v46 = vmul.f32 %v44, %v45
    %v47 = vsub.f32 1.0, %v46
    %v48 = vmul.f32 %v45, %v47
    %v49 = vadd.f32 %v45, %v48
    %vm50 = vweird.f32 %v44
    %vm51 = vweird.f32 %v45
    %vm52 = vmor %vm50, %vm51
    %v53 = vsel %vm52, %v45, %v49
    %v54 = vand.u32 2147483647, %v44
    %vm55 = vcmp.eq.f32.partialorder %v54, 8.507059e+37
    %v56 = vand.u32 %v44, 2147483648
    %v57 = vor.u32 1.1754944e-38, %v56
    %v58 = vsel %vm55, %v57, %v53
    %v59 = vmul.f32 1.0, %v58
    %v60 = vlaneseq
    %v61 = vand.u32 %v60, 127
    %62 = vset.pattern.permute.xlu0 0
    %63 = vperm.xlu0 %62, %v40
    %v64 = vpop.permute.xlu0 %63
    %vm65 = vcmp.ge.s32.totalorder %v61, %v64
    %66 = vset.pattern.permute.xlu0 0
    %67 = vperm.xlu0 %66, %v41
    %v68 = vpop.permute.xlu0 %67
    %vm69 = vcmp.lt.s32.totalorder %v61, %v68
    %vm70 = vmand %vm65, %vm69
    %v71 = vsel %vm70, 1, 0
    %v72 = vcvt.s32.f32 %v71
    %v73 = vld [vmem:[%s0] sm:$0xff]
    %v74 = vld [vmem:[%s0 + $0x8] sm:$0xff]
    %v75 = vld [vmem:[%s0 + $0x10] sm:$0xff]
    %v76 = vld [vmem:[%s0 + $0x18] sm:$0xff]
    %v77 = vld [vmem:[%s0 + $0x20] sm:$0xff]
    %v78 = vld [vmem:[%s0 + $0x28] sm:$0xff]
    %v79 = vld [vmem:[%s0 + $0x30] sm:$0xff]
    %v80 = vld [vmem:[%s0 + $0x38] sm:$0xff]
    %v81 = vld [vmem:[%s0 + $0x40] sm:$0xff]
    %v82 = vld [vmem:[%s0 + $0x48] sm:$0xff]
    %v83 = vld [vmem:[%s0 + $0x50] sm:$0xff]
    %v84 = vld [vmem:[%s0 + $0x58] sm:$0xff]
    %v85 = vld [vmem:[%s0 + $0x60] sm:$0xff]
    %v86 = vld [vmem:[%s0 + $0x68] sm:$0xff]
    %v87 = vld [vmem:[%s0 + $0x70] sm:$0xff]
    %v88 = vld [vmem:[%s0 + $0x78] sm:$0xff]
    %89 = vset.pattern.permute.xlu0 0
    %90 = vperm.xlu0 %89, %v73
    %v91 = vpop.permute.xlu0 %90
    %92 = vset.pattern.permute.xlu0 0
    %93 = vperm.xlu0 %92, %v74
    %v94 = vpop.permute.xlu0 %93
    %95 = vset.pattern.permute.xlu0 0
    %96 = vperm.xlu0 %95, %v75
    %v97 = vpop.permute.xlu0 %96
    %98 = vset.pattern.permute.xlu0 0
    %99 = vperm.xlu0 %98, %v76
    %v100 = vpop.permute.xlu0 %99
    %101 = vset.pattern.permute.xlu0 0
    %102 = vperm.xlu0 %101, %v77
    %v103 = vpop.permute.xlu0 %102
    %104 = vset.pattern.permute.xlu0 0
    %105 = vperm.xlu0 %104, %v78
    %v106 = vpop.permute.xlu0 %105
    %107 = vset.pattern.permute.xlu0 0
    %108 = vperm.xlu0 %107, %v79
    %v109 = vpop.permute.xlu0 %108
    %110 = vset.pattern.permute.xlu0 0
    %111 = vperm.xlu0 %110, %v80
    %v112 = vpop.permute.xlu0 %111
    %113 = vset.pattern.permute.xlu0 0
    %114 = vperm.xlu0 %113, %v81
    %v115 = vpop.permute.xlu0 %114
    %116 = vset.pattern.permute.xlu0 0
    %117 = vperm.xlu0 %116, %v82
    %v118 = vpop.permute.xlu0 %117
    %119 = vset.pattern.permute.xlu0 0
    %120 = vperm.xlu0 %119, %v83
    %v121 = vpop.permute.xlu0 %120
    %122 = vset.pattern.permute.xlu0 0
    %123 = vperm.xlu0 %122, %v84
    %v124 = vpop.permute.xlu0 %123
    %125 = vset.pattern.permute.xlu0 0
    %126 = vperm.xlu0 %125, %v85
    %v127 = vpop.permute.xlu0 %126
    %128 = vset.pattern.permute.xlu0 0
    %129 = vperm.xlu0 %128, %v86
    %v130 = vpop.permute.xlu0 %129
    %131 = vset.pattern.permute.xlu0 0
    %132 = vperm.xlu0 %131, %v87
    %v133 = vpop.permute.xlu0 %132
    %134 = vset.pattern.permute.xlu0 0
    %135 = vperm.xlu0 %134, %v88
    %v136 = vpop.permute.xlu0 %135
    %vm137 = vcmp.eq.s32.totalorder %v61, %v91
    %vm138 = vcmp.eq.s32.totalorder %v61, %v94
    %vm139 = vcmp.eq.s32.totalorder %v61, %v97
    %vm140 = vcmp.eq.s32.totalorder %v61, %v100
    %vm141 = vcmp.eq.s32.totalorder %v61, %v103
    %vm142 = vcmp.eq.s32.totalorder %v61, %v106
    %vm143 = vcmp.eq.s32.totalorder %v61, %v109
    %vm144 = vcmp.eq.s32.totalorder %v61, %v112
    %vm145 = vcmp.eq.s32.totalorder %v61, %v115
    %vm146 = vcmp.eq.s32.totalorder %v61, %v118
    %vm147 = vcmp.eq.s32.totalorder %v61, %v121
    %vm148 = vcmp.eq.s32.totalorder %v61, %v124
    %vm149 = vcmp.eq.s32.totalorder %v61, %v127
    %vm150 = vcmp.eq.s32.totalorder %v61, %v130
    %vm151 = vcmp.eq.s32.totalorder %v61, %v133
    %vm152 = vcmp.eq.s32.totalorder %v61, %v136
    %v153 = vsel %vm137, 1, 0
    %v154 = vsel %vm138, 1, 0
    %v155 = vsel %vm139, 1, 0
    %v156 = vsel %vm140, 1, 0
    %v157 = vsel %vm141, 1, 0
    %v158 = vsel %vm142, 1, 0
    %v159 = vsel %vm143, 1, 0
    %v160 = vsel %vm144, 1, 0
    %v161 = vsel %vm145, 1, 0
    %v162 = vsel %vm146, 1, 0
    %v163 = vsel %vm147, 1, 0
    %v164 = vsel %vm148, 1, 0
    %v165 = vsel %vm149, 1, 0
    %v166 = vsel %vm150, 1, 0
    %v167 = vsel %vm151, 1, 0
    %v168 = vsel %vm152, 1, 0
    %v169 = vcvt.s32.f32 %v153
    %v170 = vcvt.s32.f32 %v154
    %v171 = vcvt.s32.f32 %v155
    %v172 = vcvt.s32.f32 %v156
    %v173 = vcvt.s32.f32 %v157
    %v174 = vcvt.s32.f32 %v158
    %v175 = vcvt.s32.f32 %v159
    %v176 = vcvt.s32.f32 %v160
    %v177 = vcvt.s32.f32 %v161
    %v178 = vcvt.s32.f32 %v162
    %v179 = vcvt.s32.f32 %v163
    %v180 = vcvt.s32.f32 %v164
    %v181 = vcvt.s32.f32 %v165
    %v182 = vcvt.s32.f32 %v166
    %v183 = vcvt.s32.f32 %v167
    %v184 = vcvt.s32.f32 %v168
    %185 = vmatpush.msra.mxu0 %v184
    %186 = vmatpush.msra.mxu0 %v183
    %187 = vmatpush.msra.mxu0 %v182
    %188 = vmatpush.msra.mxu0 %v181
    %189 = vmatpush.msra.mxu0 %v180
    %190 = vmatpush.msra.mxu0 %v179
    %191 = vmatpush.msra.mxu0 %v178
    %192 = vmatpush.msra.mxu0 %v177
    %193 = vmatpush.msra.mxu0 %v176
    %194 = vmatpush.msra.mxu0 %v175
    %195 = vmatpush.msra.mxu0 %v174
    %196 = vmatpush.msra.mxu0 %v173
    %197 = vmatpush.msra.mxu0 %v172
    %198 = vmatpush.msra.mxu0 %v171
    %199 = vmatpush.msra.mxu0 %v170
    %200 = vmatpush.msra.mxu0 %v169
    %201 = vmatmul.f32.gmra.mxu0 %v72
    %v202 = vpop.f32.mrf.mxu0
    %v203 = vadd.f32 0.0, %v202
    %204 = vdwg.mxu0
    %v205 = vld [vmem:[%s3] sm:$0xff]
    %v206 = vld [vmem:[%s3 + $0x8] sm:$0xff]
    %v207 = vld [vmem:[%s3 + $0x10] sm:$0xff]
    %v208 = vld [vmem:[%s3 + $0x18] sm:$0xff]
    %v209 = vld [vmem:[%s3 + $0x20] sm:$0xff]
    %v210 = vld [vmem:[%s3 + $0x28] sm:$0xff]
    %v211 = vld [vmem:[%s3 + $0x30] sm:$0xff]
    %v212 = vld [vmem:[%s3 + $0x38] sm:$0xff]
    %v213 = vld [vmem:[%s3 + $0x40] sm:$0xff]
    %v214 = vld [vmem:[%s3 + $0x48] sm:$0xff]
    %v215 = vld [vmem:[%s3 + $0x50] sm:$0xff]
    %v216 = vld [vmem:[%s3 + $0x58] sm:$0xff]
    %v217 = vld [vmem:[%s3 + $0x60] sm:$0xff]
    %v218 = vld [vmem:[%s3 + $0x68] sm:$0xff]
    %v219 = vld [vmem:[%s3 + $0x70] sm:$0xff]
    %v220 = vld [vmem:[%s3 + $0x78] sm:$0xff]
    %221 = vmatpush.msra.mxu0 %v220
    %222 = vmatpush.msra.mxu0 %v219
    %223 = vmatpush.msra.mxu0 %v218
    %224 = vmatpush.msra.mxu0 %v217
    %225 = vmatpush.msra.mxu0 %v216
    %226 = vmatpush.msra.mxu0 %v215
    %227 = vmatpush.msra.mxu0 %v214
    %228 = vmatpush.msra.mxu0 %v213
    %229 = vmatpush.msra.mxu0 %v212
    %230 = vmatpush.msra.mxu0 %v211
    %231 = vmatpush.msra.mxu0 %v210
    %232 = vmatpush.msra.mxu0 %v209
    %233 = vmatpush.msra.mxu0 %v208
    %234 = vmatpush.msra.mxu0 %v207
    %235 = vmatpush.msra.mxu0 %v206
    %236 = vmatpush.msra.mxu0 %v205
    %237 = vmatmul.f32.gmra.mxu0 %v203
    %v238 = vpop.f32.mrf.mxu0
    %v239 = vadd.f32 0.0, %v238
    %240 = vdwg.mxu0
    %242 = vset.pattern.permute.xlu0 0
    %243 = vperm.xlu0 %242, %v59
    %v244 = vpop.permute.xlu0 %243
    %v246 = vmul.f32 %v239, %v244
    %v247 = vld [vmem:[#allocation2] sm:$0xff]
    %v248 = vld [vmem:[#allocation2 + $0x8] sm:$0xff]
    %v249 = vld [vmem:[#allocation2 + $0x10] sm:$0xff]
    %v250 = vld [vmem:[#allocation2 + $0x18] sm:$0xff]
    %v251 = vld [vmem:[#allocation2 + $0x20] sm:$0xff]
    %v252 = vld [vmem:[#allocation2 + $0x28] sm:$0xff]
    %v253 = vld [vmem:[#allocation2 + $0x30] sm:$0xff]
    %v254 = vld [vmem:[#allocation2 + $0x38] sm:$0xff]
    %v255 = vld [vmem:[#allocation2 + $0x40] sm:$0xff]
    %v256 = vld [vmem:[#allocation2 + $0x48] sm:$0xff]
    %v257 = vld [vmem:[#allocation2 + $0x50] sm:$0xff]
    %v258 = vld [vmem:[#allocation2 + $0x58] sm:$0xff]
    %v259 = vld [vmem:[#allocation2 + $0x60] sm:$0xff]
    %v260 = vld [vmem:[#allocation2 + $0x68] sm:$0xff]
    %v261 = vld [vmem:[#allocation2 + $0x70] sm:$0xff]
    %v262 = vld [vmem:[#allocation2 + $0x78] sm:$0xff]
    %v263 = vld [vmem:[%s5] sm:$0x1]
    %v265 = vperm.slane %v263, 0
    %267 = vmatpush.msra.mxu0 %v262
    %268 = vmatpush.msra.mxu0 %v261
    %269 = vmatpush.msra.mxu0 %v260
    %270 = vmatpush.msra.mxu0 %v259
    %271 = vmatpush.msra.mxu0 %v258
    %272 = vmatpush.msra.mxu0 %v257
    %273 = vmatpush.msra.mxu0 %v256
    %274 = vmatpush.msra.mxu0 %v255
    %275 = vmatpush.msra.mxu0 %v254
    %276 = vmatpush.msra.mxu0 %v253
    %277 = vmatpush.msra.mxu0 %v252
    %278 = vmatpush.msra.mxu0 %v251
    %279 = vmatpush.msra.mxu0 %v250
    %280 = vmatpush.msra.mxu0 %v249
    %281 = vmatpush.msra.mxu0 %v248
    %282 = vmatpush.msra.mxu0 %v247
    %283 = vmatmul.f32.gmra.mxu0 %v246
    %v284 = vpop.f32.mrf.mxu0
    %v285 = vadd.f32 %v265, %v284
    %286 = vdwg.mxu0
    %287 = vst [vmem:[#allocation5] sm:$0xff] %v285
    // Predicated region
    $region30: #{tpu_custom_call.1} parent=1 // pred_check
      _
    $region31: #{tpu_custom_call.1} parent=1 // pred_check_branch
      %289 = sbr.rel (0) target = $region33
    $region32: #{tpu_custom_call.1} parent=1 // pred_region
      %291 = vsyncadd [#allocation4], 0
      %s293 = sshll.u32 [#allocation5], 4
      %s294 = int_to_ptr.vmem [resolvable:$true] %s293
      %s295 = sshll.u32 %s6, 4
      %s296 = int_to_ptr.hbm [resolvable:$true] %s295
      %298 = dma.vmem_to_hbm [thread:$0]  %s294, 128, %s296, [#allocation4]
    $region33: #{tpu_custom_call.1} parent=1 // pred_fallthru
      _
    // Predicated region
    $region34: #{tpu_custom_call.1} parent=1 // pred_check
      _
    $region35: #{tpu_custom_call.1} parent=1 // pred_check_branch
      %300 = sbr.rel (0) target = $region37
    $region36: #{tpu_custom_call.1} parent=1 // pred_region
      %302 = dma.done [#allocation4], 128
    $region37: #{tpu_custom_call.1} parent=1 // pred_fallthru
      _
    %303 = vsyncpa [#allocation3], 1
    %304 = vsyncpa [#allocation4], 1

</llo_original>
